<compile_context>
chip_gen: v5e
topology: v5e:2x2
jax: 0.10.0
libtpu: 0.0.40
codegen_flags: <defaults>
</compile_context>

<pallas_src>
import jax
import jax.numpy as jnp
from jax import lax
from jax.experimental import pallas as pl
from jax.experimental.pallas import tpu as pltpu

NUM_CLASSES = 5
C_PAD = 128                       # lane-dense padded class dim for W/b/compute
_MASK = -1e30                     # "minus infinity" for padded class columns
                                  # (a true -inf would give NaN via inf-inf)
_VMEM_TILE_BUDGET = 12 * 1024 * 1024   # streamed-tile budget: safe on v5e/v6e/v7x
                                       # default scoped VMEM (16/32/32 MiB)


def _round_up(n: int, m: int) -> int:
    return ((n + m - 1) // m) * m


def _cdiv(a: int, b: int) -> int:
    return (a + b - 1) // b


def _tile_rows(batch: int, d: int) -> int:
    """VMEM- and input_size-aware batch tile (multiple of 8 sublanes)."""
    # Per-row VMEM bytes: double-buffered x tile (2*d f32) plus the lane-padded
    # output/target tiles and ~6 lane-wide (128 f32) live intermediates of the
    # fused softmax / loss math.
    per_row = 4 * (2 * d + 8 * C_PAD)
    t = (_VMEM_TILE_BUDGET // per_row) // 8 * 8
    t = max(128, min(t, 2048))
    # v7x megacore: keep >= 2 tiles so the "parallel" axis can be split across
    # both TensorCores (harmless on single-core v5e/v6e).
    if batch > t:
        t = min(t, _round_up((batch + 1) // 2, 8))
    # Never exceed the (sublane-rounded) batch itself.
    t = min(t, _round_up(batch, 8))
    return max(t, 8)


# ----------------------------------------------------------------------------
# Kernel 1: prediction path — logits + softmax; only the 5 real class columns
# are written back (masked store into a (tile_b, 5) block).
# ----------------------------------------------------------------------------
def _fwd_kernel(x_ref, w_ref, b_ref, p_ref):
    logits = jnp.dot(x_ref[...], w_ref[...],
                     preferred_element_type=jnp.float32) + b_ref[...]
    col = lax.broadcasted_iota(jnp.int32, logits.shape, 1)
    logits = jnp.where(col < NUM_CLASSES, logits, _MASK)   # mask pad classes
    m = jnp.max(logits, axis=-1, keepdims=True)
    e = jnp.exp(logits - m)
    denom = jnp.sum(e, axis=-1, keepdims=True)
    probs = e * pl.reciprocal(denom, approx=False)
    p_ref[...] = probs[:, :NUM_CLASSES].astype(p_ref.dtype)


# ----------------------------------------------------------------------------
# Kernel 2: fused loss path — logits -> softmax -> log_softmax(probs) -> NLL,
# exactly like F.cross_entropy(softmax(linear(x)), y) in the reference module.
# Emits per-tile, per-lane partial NLL sums; the mean is taken in the wrapper.
# ----------------------------------------------------------------------------
def _fused_loss_kernel(x_ref, w_ref, b_ref, y_ref, loss_ref):
    logits = jnp.dot(x_ref[...], w_ref[...],
                     preferred_element_type=jnp.float32) + b_ref[...]
    col = lax.broadcasted_iota(jnp.int32, logits.shape, 1)
    valid = col < NUM_CLASSES
    logits = jnp.where(valid, logits, _MASK)

    # softmax(logits) over the real classes
    m = jnp.max(logits, axis=-1, keepdims=True)
    e = jnp.exp(logits - m)
    probs = e * pl.reciprocal(jnp.sum(e, axis=-1, keepdims=True), approx=False)

    # cross_entropy(probs, y) == NLL(log_softmax(probs), y)  (double softmax,
    # faithful to the PyTorch reference which calls cross_entropy on the probs)
    p = jnp.where(valid, probs, _MASK)
    m2 = jnp.max(p, axis=-1, keepdims=True)
    logz = m2 + jnp.log(jnp.sum(jnp.exp(p - m2), axis=-1, keepdims=True))
    logp = p - logz

    tgt = y_ref[...]                                    # (tile_b, 1) int32; -1 on pad rows
    picked = jnp.where(col == tgt, logp, 0.0)           # in-kernel one-hot select
    partial = -jnp.sum(picked, axis=0, keepdims=True)   # (1, C_PAD) lane partial sums
    loss_ref[...] = partial.reshape(loss_ref.shape).astype(loss_ref.dtype)


# ----------------------------------------------------------------------------
# Wrappers
# ----------------------------------------------------------------------------
def linear_softmax(x, w_pad, b_pad, *, tile_rows=None):
    batch, d = x.shape
    tile_b = tile_rows if tile_rows is not None else _tile_rows(batch, d)
    n_tiles = _cdiv(batch, tile_b)
    return pl.pallas_call(
        _fwd_kernel,
        out_shape=jax.ShapeDtypeStruct((batch, NUM_CLASSES), jnp.float32),
        grid_spec=pltpu.PrefetchScalarGridSpec(
            num_scalar_prefetch=0,
            grid=(n_tiles,),
            in_specs=[
                pl.BlockSpec((tile_b, d), lambda i: (i, 0)),   # x: streamed per tile
                pl.BlockSpec((d, C_PAD), lambda i: (0, 0)),    # W: resident
                pl.BlockSpec((1, C_PAD), lambda i: (0, 0)),    # b: resident row
            ],
            # last block dim equals the full array dim (5) -> masked store,
            # fully contiguous HBM writeback, no XLA slice pass needed.
            out_specs=pl.BlockSpec((tile_b, NUM_CLASSES), lambda i: (i, 0)),
        ),
        compiler_params=pltpu.CompilerParams(
            dimension_semantics=("parallel",)),
    )(x, w_pad, b_pad)


def linear_softmax_ce(x, w_pad, b_pad, y, *, tile_rows=None):
    batch, d = x.shape
    tile_b = tile_rows if tile_rows is not None else _tile_rows(batch, d)
    n_tiles = _cdiv(batch, tile_b)
    # Only the tiny (B, 1) int32 target column is padded; sentinel -1 matches
    # no class column, so padded / out-of-bounds rows contribute exactly 0.
    y_col = jnp.full((n_tiles * tile_b, 1), -1, jnp.int32).at[:batch, 0].set(
        y.astype(jnp.int32))
    partials = pl.pallas_call(
        _fused_loss_kernel,
        out_shape=jax.ShapeDtypeStruct((n_tiles, 1, C_PAD), jnp.float32),
        grid_spec=pltpu.PrefetchScalarGridSpec(
            num_scalar_prefetch=0,
            grid=(n_tiles,),
            in_specs=[
                pl.BlockSpec((tile_b, d), lambda i: (i, 0)),   # x: streamed, unpadded
                pl.BlockSpec((d, C_PAD), lambda i: (0, 0)),    # W: resident
                pl.BlockSpec((1, C_PAD), lambda i: (0, 0)),    # b: resident
                pl.BlockSpec((tile_b, 1), lambda i: (i, 0)),   # int targets, no one-hot
            ],
            out_specs=pl.BlockSpec((1, 1, C_PAD), lambda i: (i, 0, 0)),
        ),
        compiler_params=pltpu.CompilerParams(
            dimension_semantics=("parallel",)),
    )(x, w_pad, b_pad, y_col)
    # Final mean over a few hundred scalars is free in XLA.
    return jnp.sum(partials) / batch


class TorchModelPallas:
    """JAX/Pallas port of TorchModel(input_size)."""

    def __init__(self, input_size, key):
        self.input_size = input_size
        self.num_classes = NUM_CLASSES
        kw, kb = jax.random.split(key)
        bound = 1.0 / jnp.sqrt(jnp.float32(input_size))
        self.w = jax.random.uniform(kw, (input_size, NUM_CLASSES),
                                    jnp.float32, -bound, bound)
        self.b = jax.random.uniform(kb, (NUM_CLASSES,),
                                    jnp.float32, -bound, bound)
        # Lane-padded parameter copies built once (zero-padded extra columns).
        self.w_pad = jnp.zeros((input_size, C_PAD), jnp.float32).at[
            :, :NUM_CLASSES].set(self.w)
        self.b_pad = jnp.zeros((1, C_PAD), jnp.float32).at[
            0, :NUM_CLASSES].set(self.b)

    def __call__(self, x, y=None, *, tile_rows=None):
        if y is not None:
            return linear_softmax_ce(x, self.w_pad, self.b_pad, y,
                                     tile_rows=tile_rows)
        return linear_softmax(x, self.w_pad, self.b_pad, tile_rows=tile_rows)


if __name__ == "__main__":
    key = jax.random.PRNGKey(0)
    k_model, k_x = jax.random.split(key)

    input_size = 32
    model = TorchModelPallas(input_size, k_model)

    def check(batch, tile_rows=None):
        kx, ky = jax.random.split(jax.random.fold_in(k_x, batch))
        x = jax.random.normal(kx, (batch, input_size), jnp.float32)
        y = jax.random.randint(ky, (batch,), 0, NUM_CLASSES)

        y_pred = jax.block_until_ready(model(x, tile_rows=tile_rows))       # prediction path
        loss = jax.block_until_ready(model(x, y, tile_rows=tile_rows))      # fused loss path

        # Pure-JAX reference (mirrors the PyTorch module exactly)
        logits_ref = x @ model.w + model.b
        y_pred_ref = jax.nn.softmax(logits_ref, axis=1)
        logp_ref = jax.nn.log_softmax(y_pred_ref, axis=1)
        loss_ref = -jnp.mean(logp_ref[jnp.arange(batch), y])

        assert y_pred.shape == (batch, NUM_CLASSES)
        assert jnp.allclose(y_pred, y_pred_ref, atol=1e-5), "prediction mismatch"
        assert jnp.allclose(loss, loss_ref, atol=1e-5), "loss mismatch"

    check(8)                   # exact single-tile fit
    check(6)                   # ragged batch smaller than one sublane tile
    check(70, tile_rows=32)    # multi-tile grid with a ragged last tile

    print("KERNEL_OK")
</pallas_src>

<mosaic_0001>
module attributes {stable_mosaic.version = 11 : i64} {
  func.func @_fwd_kernel(%arg0: i32, %arg1: memref<8x32xf32, #tpu.memory_space<vmem>>, %arg2: memref<32x128xf32, #tpu.memory_space<vmem>>, %arg3: memref<1x128xf32, #tpu.memory_space<vmem>>, %arg4: memref<8x5xf32, #tpu.memory_space<vmem>>) attributes {dimension_semantics = [#tpu.dimension_semantics<parallel>], iteration_bounds = array<i64: 1>, scalar_prefetch = 0 : i64, scratch_operands = 0 : i64, tpu.core_type = #tpu.core_type<tc>, window_params = [{transform_indices = @transform_0, window_bounds = array<i64: 8, 32>}, {pipeline_mode = #tpu.pipeline_mode<synchronous>, transform_indices = @transform_1, window_bounds = array<i64: 32, 128>}, {pipeline_mode = #tpu.pipeline_mode<synchronous>, transform_indices = @transform_2, window_bounds = array<i64: 1, 128>}, {transform_indices = @transform_3, window_bounds = array<i64: 8, 5>}]} {
    %c0 = arith.constant 0 : index
    %c0_0 = arith.constant 0 : index
    %0 = vector.load %arg1[%c0, %c0_0] : memref<8x32xf32, #tpu.memory_space<vmem>>, vector<8x32xf32>
    %c0_1 = arith.constant 0 : index
    %c0_2 = arith.constant 0 : index
    %1 = vector.load %arg2[%c0_1, %c0_2] : memref<32x128xf32, #tpu.memory_space<vmem>>, vector<32x128xf32>
    %cst = arith.constant dense<0.000000e+00> : vector<8x128xf32>
    %2 = tpu.matmul %0, %1, %cst {dimension_numbers = #tpu.dot_dimension_numbers<[1], [0], [0], [1], [0, 0, 1, 1], [], []>} : vector<8x32xf32>, vector<32x128xf32>, vector<8x128xf32> -> vector<8x128xf32>
    %c0_3 = arith.constant 0 : index
    %c0_4 = arith.constant 0 : index
    %3 = vector.load %arg3[%c0_3, %c0_4] : memref<1x128xf32, #tpu.memory_space<vmem>>, vector<1x128xf32>
    %4 = vector.broadcast %3 : vector<1x128xf32> to vector<8x128xf32>
    %5 = arith.addf %2, %4 : vector<8x128xf32>
    %6 = tpu.iota {dimensions = array<i32: 1>} : vector<8x128xi32>
    %c5_i32 = arith.constant 5 : i32
    %7 = vector.broadcast %c5_i32 : i32 to vector<8x128xi32>
    %8 = arith.cmpi slt, %6, %7 : vector<8x128xi32>
    %cst_5 = arith.constant -1.000000e+30 : f32
    %9 = vector.broadcast %cst_5 : f32 to vector<8x128xf32>
    %10 = arith.select %8, %5, %9 : vector<8x128xi1>, vector<8x128xf32>
    %cst_6 = arith.constant dense<0xFF800000> : vector<8xf32>
    %11 = vector.multi_reduction <maximumf>, %10, %cst_6 [1] : vector<8x128xf32> to vector<8xf32>
    %12 = vector.shape_cast %11 : vector<8xf32> to vector<8x1xf32>
    %13 = vector.broadcast %12 : vector<8x1xf32> to vector<8x128xf32>
    %14 = arith.subf %10, %13 : vector<8x128xf32>
    %15 = math.exp %14 : vector<8x128xf32>
    %cst_7 = arith.constant dense<0.000000e+00> : vector<8xf32>
    %16 = vector.multi_reduction <add>, %15, %cst_7 [1] : vector<8x128xf32> to vector<8xf32>
    %17 = vector.shape_cast %16 : vector<8xf32> to vector<8x1xf32>
    %18 = tpu.reciprocal %17 : vector<8x1xf32> -> vector<8x1xf32>
    %19 = vector.broadcast %18 : vector<8x1xf32> to vector<8x128xf32>
    %20 = arith.mulf %15, %19 : vector<8x128xf32>
    %21 = vector.extract_strided_slice %20 {offsets = [0, 0], sizes = [8, 5], strides = [1, 1]} : vector<8x128xf32> to vector<8x5xf32>
    %c0_8 = arith.constant 0 : index
    %c0_9 = arith.constant 0 : index
    %22 = vector.load %arg4[%c0_8, %c0_9] : memref<8x5xf32, #tpu.memory_space<vmem>>, vector<8x5xf32>
    tpu.vector_store %arg4[%c0_8, %c0_9], %21 {strides = array<i32>} : memref<8x5xf32, #tpu.memory_space<vmem>>, vector<8x5xf32>,
    return
  }
  func.func @transform_0(%arg0: i32) -> (i32, i32) {
    %c0_i32 = arith.constant 0 : i32
    %c0_i32_0 = arith.constant 0 : i32
    return %arg0, %c0_i32 : i32, i32
  }
  func.func @transform_1(%arg0: i32) -> (i32, i32) {
    %c0_i32 = arith.constant 0 : i32
    %c0_i32_0 = arith.constant 0 : i32
    %c0_i32_1 = arith.constant 0 : i32
    return %c0_i32, %c0_i32_0 : i32, i32
  }
  func.func @transform_2(%arg0: i32) -> (i32, i32) {
    %c0_i32 = arith.constant 0 : i32
    %c0_i32_0 = arith.constant 0 : i32
    %c0_i32_1 = arith.constant 0 : i32
    return %c0_i32, %c0_i32_0 : i32, i32
  }
  func.func @transform_3(%arg0: i32) -> (i32, i32) {
    %c0_i32 = arith.constant 0 : i32
    %c0_i32_0 = arith.constant 0 : i32
    return %arg0, %c0_i32 : i32, i32
  }
}

</mosaic_0001>

<llo_original>
// kernel: tpu_custom_call.1
$region0: #{tpu_custom_call.1}
  #allocation0 [shape = 'u32[]', space=smem, size = 0x4, offset = 0x4, fixed_abs, tag = 'smem constant byte address 0x4 - core index']
  #allocation1 [shape = 'u32[72,128]{1,0:T(1,128)}', space=vmem, size = 0x9000, scoped, tag = 'internal scratch']
  %s0 = inlined_call_operand.hbm [shape: f32[8,32], index: 0, kind: input, shape index: {}]
  %s1 = inlined_call_operand.hbm [shape: f32[32,128], index: 1, kind: input, shape index: {}]
  %s2 = inlined_call_operand.vmem [shape: f32[1,128], index: 2, kind: input, shape index: {}]
  %s3 = inlined_call_operand.hbm [shape: f32[8,5], index: 3, kind: output, shape index: {}]
  %s4 = sld [smem:[#allocation0]]
  $region30: #{tpu_custom_call.1} parent=0
    _
  %s6 = ssub.s32 1, %s4
  %s7 = scalar_select 0, %s6, %s4
  $region1: #{tpu_custom_call.1} parent=0
    #allocation2 [shape = 'u8[4096]{0}', space=vmem, size = 0x1000, scoped, tag = 'input window, operand 0, single buffered']
    #allocation3 [shape = 's32[1]{0}', space=sflag, size = 0x4, scoped, tag = 'scoped memory for tpu_custom_call.1']
    #allocation4 [shape = 's32[1]{0}', space=sflag, size = 0x4, scoped, tag = 'scoped memory for tpu_custom_call.1']
    #allocation5 [shape = 'u8[16384]{0}', space=vmem, size = 0x4000, scoped, tag = 'input window, operand 1, single buffered']
    #allocation6 [shape = 's32[1]{0}', space=sflag, size = 0x4, scoped, tag = 'scoped memory for tpu_custom_call.1']
    #allocation7 [shape = 'u8[4096]{0}', space=vmem, size = 0x1000, scoped, tag = 'output window, operand 0, single buffered']
    %8 = vsyncpa [#allocation3], 0
    %9 = vsyncpa [#allocation6], 0
    %10 = vsyncpa [#allocation4], 0
    // Predicated region
    $region2: #{tpu_custom_call.1} parent=1 // pred_check
      _
    $region3: #{tpu_custom_call.1} parent=1 // pred_check_branch
      %12 = sbr.rel (0) target = $region5
    $region4: #{tpu_custom_call.1} parent=1 // pred_region
      %14 = vsyncadd [#allocation3], 0
      %s16 = sshll.u32 %s0, 4
      %s17 = int_to_ptr.hbm [resolvable:$true] %s16
      %s18 = sshll.u32 [#allocation2], 4
      %s19 = int_to_ptr.vmem [resolvable:$true] %s18
      %21 = dma.hbm_to_vmem [thread:$0]  %s17, 128, %s19, [#allocation3]
    $region5: #{tpu_custom_call.1} parent=1 // pred_fallthru
      _
    // Predicated region
    $region6: #{tpu_custom_call.1} parent=1 // pred_check
      _
    $region7: #{tpu_custom_call.1} parent=1 // pred_check_branch
      %23 = sbr.rel (0) target = $region9
    $region8: #{tpu_custom_call.1} parent=1 // pred_region
      %25 = vsyncadd [#allocation6], 0
      %s26 = sshll.u32 %s1, 4
      %s27 = int_to_ptr.hbm [resolvable:$true] %s26
      %s28 = sshll.u32 [#allocation5], 4
      %s29 = int_to_ptr.vmem [resolvable:$true] %s28
      %34 = dma.hbm_to_vmem [thread:$0]  %s27, 512, %s29, [#allocation6], 128, 128, 8
    $region9: #{tpu_custom_call.1} parent=1 // pred_fallthru
      _
    // Predicated region
    $region10: #{tpu_custom_call.1} parent=1 // pred_check
      _
    $region11: #{tpu_custom_call.1} parent=1 // pred_check_branch
      %36 = sbr.rel (0) target = $region13
    $region12: #{tpu_custom_call.1} parent=1 // pred_region
      _
    $region13: #{tpu_custom_call.1} parent=1 // pred_fallthru
      _
    // Predicated region
    $region14: #{tpu_custom_call.1} parent=1 // pred_check
      _
    $region15: #{tpu_custom_call.1} parent=1 // pred_check_branch
      %38 = sbr.rel (0) target = $region17
    $region16: #{tpu_custom_call.1} parent=1 // pred_region
      %40 = dma.done [#allocation3], 128
    $region17: #{tpu_custom_call.1} parent=1 // pred_fallthru
      _
    // Predicated region
    $region18: #{tpu_custom_call.1} parent=1 // pred_check
      _
    $region19: #{tpu_custom_call.1} parent=1 // pred_check_branch
      %42 = sbr.rel (0) target = $region21
    $region20: #{tpu_custom_call.1} parent=1 // pred_region
      %44 = dma.done [#allocation6], 512
    $region21: #{tpu_custom_call.1} parent=1 // pred_fallthru
      _
    %v45 = vld [vmem:[#allocation2] sm:$0xff]
    %v46 = vld [vmem:[#allocation5] sm:$0xff]
    %v47 = vld [vmem:[#allocation5 + $0x8] sm:$0xff]
    %v48 = vld [vmem:[#allocation5 + $0x10] sm:$0xff]
    %v49 = vld [vmem:[#allocation5 + $0x18] sm:$0xff]
    %v50 = vld [vmem:[%s2] sm:$0x1]
    %v52 = vperm.slane %v50, 0
    %vm54 = vcmask 261120
    %v56 = vsel %vm54, %v45, 0
    %58 = vmatpush.msra.mxu0 0.0
    %59 = vmatpush.msra.mxu0 0.0
    %60 = vmatpush.msra.mxu0 0.0
    %61 = vmatpush.msra.mxu0 0.0
    %62 = vmatpush.msra.mxu0 0.0
    %63 = vmatpush.msra.mxu0 0.0
    %64 = vmatpush.msra.mxu0 0.0
    %65 = vmatpush.msra.mxu0 0.0
    %66 = vmatpush.msra.mxu0 0.0
    %67 = vmatpush.msra.mxu0 0.0
    %68 = vmatpush.msra.mxu0 0.0
    %69 = vmatpush.msra.mxu0 0.0
    %70 = vmatpush.msra.mxu0 %v49
    %71 = vmatpush.msra.mxu0 %v48
    %72 = vmatpush.msra.mxu0 %v47
    %73 = vmatpush.msra.mxu0 %v46
    %74 = vmatmul.f32.gmra.mxu0 %v56
    %v75 = vpop.f32.mrf.mxu0
    %v76 = vadd.f32 %v52, %v75
    %77 = vdwg.mxu0
    %v78 = vlaneseq
    %v79 = vand.u32 %v78, 127
    %vm80 = vcmp.lt.s32.totalorder %v79, 5
    %v81 = vsel %vm80, %v76, -1e+30
    %82 = vmax.xlane.f32.xlu0 %v81
    %v83 = vpop.xlane.xlu0 %82
    %v84 = vsub.f32 %v81, %v83
    %v85 = vmul.f32 %v84, 1.442695
    %v86 = vpow.pop %v85
    %87 = vadd.xlane.f32.xlu0 %v86
    %v88 = vpop.xlane.xlu0 %87
    %v89 = vrcp.pop %v88
    %v90 = vmul.f32 %v88, %v89
    %v91 = vsub.f32 1.0, %v90
    %v92 = vmul.f32 %v89, %v91
    %v93 = vadd.f32 %v89, %v92
    %vm94 = vweird.f32 %v88
    %vm95 = vweird.f32 %v89
    %vm96 = vmor %vm94, %vm95
    %v97 = vsel %vm96, %v89, %v93
    %v98 = vand.u32 2147483647, %v88
    %vm99 = vcmp.eq.f32.partialorder %v98, 8.507059e+37
    %v100 = vand.u32 %v88, 2147483648
    %v101 = vor.u32 1.1754944e-38, %v100
    %v102 = vsel %vm99, %v101, %v97
    %v103 = vmul.f32 %v86, %v102
    %vm104 = vcmask 39936
    %105 = vst.msk [vmem:[#allocation7] sm:$0xff] %vm104, %v103
    // Predicated region
    $region22: #{tpu_custom_call.1} parent=1 // pred_check
      _
    $region23: #{tpu_custom_call.1} parent=1 // pred_check_branch
      %107 = sbr.rel (0) target = $region25
    $region24: #{tpu_custom_call.1} parent=1 // pred_region
      %109 = vsyncadd [#allocation4], 0
      %s111 = sshll.u32 [#allocation7], 4
      %s112 = int_to_ptr.vmem [resolvable:$true] %s111
      %s113 = sshll.u32 %s3, 4
      %s114 = int_to_ptr.hbm [resolvable:$true] %s113
      %116 = dma.vmem_to_hbm [thread:$0]  %s112, 128, %s114, [#allocation4]
    $region25: #{tpu_custom_call.1} parent=1 // pred_fallthru
      _
    // Predicated region
    $region26: #{tpu_custom_call.1} parent=1 // pred_check
      _
    $region27: #{tpu_custom_call.1} parent=1 // pred_check_branch
      %118 = sbr.rel (0) target = $region29
    $region28: #{tpu_custom_call.1} parent=1 // pred_region
      %120 = dma.done [#allocation4], 128
    $region29: #{tpu_custom_call.1} parent=1 // pred_fallthru
      _
    %121 = vsyncpa [#allocation3], 1
    %122 = vsyncpa [#allocation6], 1
    %123 = vsyncpa [#allocation4], 1

</llo_original>
